<compile_context>
chip_gen: v7x
topology: tpu7x:2x2x1
jax: 0.10.0
libtpu: 0.0.40
codegen_flags: <defaults>
</compile_context>

<pallas_src>
import jax
import jax.numpy as jnp
from jax.experimental import pallas as pl
from jax.experimental.pallas import tpu as pltpu

# ---- static configuration -------------------------------------------------
SEQ_LEN = 8          # T
BATCH = 2            # B
EMBED_DIM = 32       # encoder_embed_dim
CONV_DIM = 32        # encoder_conv_dim
NUM_HEADS = 4        # encoder_attention_heads
KERNEL_SIZE = 3      # lightweight conv kernel (odd -> padding_l = K // 2)
PAD_L = KERNEL_SIZE // 2
FFN_DIM = 64         # encoder_ffn_embed_dim
HEAD_DIM = CONV_DIM // NUM_HEADS
LN_EPS = 1e-5

ROWS = SEQ_LEN * BATCH            # flattened (T*B) row count, row = t*B + b

assert KERNEL_SIZE % 2 == 1, "kernel assumes odd kernel_size (single padding_l)"
assert CONV_DIM % NUM_HEADS == 0

# ---- packed-parameter slab layout ------------------------------------------
# Weight slab: (W_ROWS, W_LANES) f32, all matmul weights pre-transposed so the
# kernel computes x @ W directly.
W_LANES = 2 * CONV_DIM            # 64 (max output width of any matmul)
R_W1 = 0                          # w1t  (E, 2*Cc)  rows [0, 32)
R_W2 = R_W1 + EMBED_DIM           # w2t  (Cc, E)    rows [32, 64), lanes [0, E)
R_WF1 = R_W2 + CONV_DIM           # wf1t (E, F)     rows [64, 96)
R_WF2 = R_WF1 + EMBED_DIM         # wf2t (F, E)     rows [96, 160), lanes [0, E)
W_ROWS = R_WF2 + FFN_DIM          # 160

# Bias/vector slab: (B_ROWS, B_LANES) f32, one row per small vector.
B_LANES = 2 * CONV_DIM            # 64
ROW_B1 = 0                        # linear1 bias (64 lanes)
ROW_WCONV = 1                     # softmaxed conv taps, rows 1..1+K-1 (32 lanes)
ROW_B2 = ROW_WCONV + KERNEL_SIZE  # 4
ROW_G1 = ROW_B2 + 1               # 5
ROW_BE1 = ROW_G1 + 1              # 6
ROW_BF1 = ROW_BE1 + 1             # 7  (64 lanes)
ROW_BF2 = ROW_BF1 + 1             # 8
ROW_G2 = ROW_BF2 + 1              # 9
ROW_BE2 = ROW_G2 + 1              # 10
B_ROWS = 16


# ---- in-kernel one-pass LayerNorm ------------------------------------------
def _layer_norm_1pass(x, gamma, beta):
    inv_n = 1.0 / x.shape[-1]
    s = jnp.sum(x, axis=-1, keepdims=True)
    ss = jnp.sum(x * x, axis=-1, keepdims=True)
    mean = s * inv_n
    var = ss * inv_n - mean * mean
    return (x - mean) * jax.lax.rsqrt(var + LN_EPS) * gamma + beta


# ---- Pallas kernel ----------------------------------------------------------
def lightconv_encoder_layer_kernel(x_ref, w_ref, b_ref, o_ref):
    # x_ref: (R, E) rows = t*B + b;  w_ref: (W_ROWS, W_LANES);  b_ref: (B_ROWS, B_LANES)
    x = x_ref[...]                                   # (R, E) residual #1
    bs = b_ref[...]                                  # whole bias slab, loaded once

    # ---- linear1 (fused GLU halves) + GLU ----
    w1t = w_ref[R_W1:R_W1 + EMBED_DIM, :]            # (E, 2*Cc)
    h = jnp.dot(x, w1t, preferred_element_type=jnp.float32) + bs[ROW_B1:ROW_B1 + 1, :]
    a = h[:, :CONV_DIM]                              # value half  (R, Cc)
    g = h[:, CONV_DIM:]                              # gate half   (R, Cc)
    y = a * jax.nn.sigmoid(g)                        # GLU         (R, Cc)
    # TODO(synk): encoder_padding_mask (masked_fill before the conv) not implemented;
    #             kernel covers the encoder_padding_mask=None path only.

    # ---- lightweight conv (weight_softmax already applied outside) ----
    # conv[t] = sum_k w[k] * y[t + k - PAD_L]; in row space a time shift of s is a
    # row shift of s*B.  Implemented as sublane rolls + edge masks (no concatenate).
    row_ids = jax.lax.broadcasted_iota(jnp.int32, (ROWS, CONV_DIM), 0)
    conv = jnp.zeros((ROWS, CONV_DIM), jnp.float32)
    for k in range(KERNEL_SIZE):                     # static, unrolled
        s = k - PAD_L                                # time shift of this tap
        wk = bs[ROW_WCONV + k:ROW_WCONV + k + 1, :CONV_DIM]   # (1, Cc)
        if s == 0:
            tap = y
        else:
            shift = (-s * BATCH) % ROWS              # rolled[r] = y[r + s*B]
            rolled = pltpu.roll(y, shift, axis=0)
            if s > 0:
                tap = jnp.where(row_ids < ROWS - s * BATCH, rolled, 0.0)
            else:
                tap = jnp.where(row_ids >= (-s) * BATCH, rolled, 0.0)
        conv = conv + wk * tap

    # ---- linear2 + residual + layer_norm1 (post-norm) ----
    w2t = w_ref[R_W2:R_W2 + CONV_DIM, :EMBED_DIM]    # (Cc, E)
    z = jnp.dot(conv, w2t, preferred_element_type=jnp.float32) + bs[ROW_B2:ROW_B2 + 1, :EMBED_DIM]
    z = x + z
    z = _layer_norm_1pass(z, bs[ROW_G1:ROW_G1 + 1, :EMBED_DIM],
                          bs[ROW_BE1:ROW_BE1 + 1, :EMBED_DIM])

    # ---- FFN: relu(fc1) -> fc2 + residual + layer_norm2 (post-norm) ----
    wf1t = w_ref[R_WF1:R_WF1 + EMBED_DIM, :]         # (E, F)
    f = jnp.dot(z, wf1t, preferred_element_type=jnp.float32) + bs[ROW_BF1:ROW_BF1 + 1, :]
    f = jnp.maximum(f, 0.0)
    wf2t = w_ref[R_WF2:R_WF2 + FFN_DIM, :EMBED_DIM]  # (F, E)
    f = jnp.dot(f, wf2t, preferred_element_type=jnp.float32) + bs[ROW_BF2:ROW_BF2 + 1, :EMBED_DIM]
    out = z + f
    out = _layer_norm_1pass(out, bs[ROW_G2:ROW_G2 + 1, :EMBED_DIM],
                            bs[ROW_BE2:ROW_BE2 + 1, :EMBED_DIM])

    o_ref[...] = out.astype(o_ref.dtype)


# ---- wrapper ----------------------------------------------------------------
@jax.jit
def lightconv_encoder_layer(x_tbe, wslab, bslab):
    """x_tbe: (T, B, E) float32 -> (T, B, E) float32 (same layout as the module)."""
    T, B, E = x_tbe.shape
    x2 = x_tbe.reshape(T * B, E)                     # time-major flattening, no transpose
    out2 = pl.pallas_call(
        lightconv_encoder_layer_kernel,
        out_shape=jax.ShapeDtypeStruct((T * B, E), jnp.float32),
    )(x2, wslab, bslab)
    return out2.reshape(T, B, E)


# ---- parameter init + packing (deterministic, synthetic) --------------------
def init_params(key):
    ks = jax.random.split(key, 5)
    scale = 0.1
    W1 = scale * jax.random.normal(ks[0], (2 * CONV_DIM, EMBED_DIM), jnp.float32)
    b1 = jnp.zeros((2 * CONV_DIM,), jnp.float32)
    # LightweightConv weight: (H, 1, K) in torch -> (H, K) here (raw, pre-softmax)
    Wconv = scale * jax.random.normal(ks[1], (NUM_HEADS, KERNEL_SIZE), jnp.float32)
    W2 = scale * jax.random.normal(ks[2], (EMBED_DIM, CONV_DIM), jnp.float32)
    b2 = jnp.zeros((EMBED_DIM,), jnp.float32)
    Wf1 = scale * jax.random.normal(ks[3], (FFN_DIM, EMBED_DIM), jnp.float32)
    bf1 = jnp.zeros((FFN_DIM,), jnp.float32)
    Wf2 = scale * jax.random.normal(ks[4], (EMBED_DIM, FFN_DIM), jnp.float32)
    bf2 = jnp.zeros((EMBED_DIM,), jnp.float32)
    g1 = jnp.ones((EMBED_DIM,), jnp.float32)
    be1 = jnp.zeros((EMBED_DIM,), jnp.float32)
    g2 = jnp.ones((EMBED_DIM,), jnp.float32)
    be2 = jnp.zeros((EMBED_DIM,), jnp.float32)

    raw = dict(W1=W1, b1=b1, Wconv=Wconv, W2=W2, b2=b2,
               Wf1=Wf1, bf1=bf1, Wf2=Wf2, bf2=bf2,
               g1=g1, be1=be1, g2=g2, be2=be2)

    # Parameter transforms done once outside the kernel (eval mode, weight_dropout=0):
    #   weight_softmax over the kernel dim, per-head -> per-channel expansion,
    #   all matmul weights pre-transposed, everything packed into two slabs.
    wconv_sm = jax.nn.softmax(Wconv, axis=-1)                  # (H, K)
    wconv_ch = jnp.repeat(wconv_sm, HEAD_DIM, axis=0).T        # (K, Cc)

    wslab = jnp.zeros((W_ROWS, W_LANES), jnp.float32)
    wslab = wslab.at[R_W1:R_W1 + EMBED_DIM, :].set(W1.T)                   # (32, 64)
    wslab = wslab.at[R_W2:R_W2 + CONV_DIM, :EMBED_DIM].set(W2.T)           # (32, 32)
    wslab = wslab.at[R_WF1:R_WF1 + EMBED_DIM, :].set(Wf1.T)                # (32, 64)
    wslab = wslab.at[R_WF2:R_WF2 + FFN_DIM, :EMBED_DIM].set(Wf2.T)         # (64, 32)

    bslab = jnp.zeros((B_ROWS, B_LANES), jnp.float32)
    bslab = bslab.at[ROW_B1, :].set(b1)
    bslab = bslab.at[ROW_WCONV:ROW_WCONV + KERNEL_SIZE, :CONV_DIM].set(wconv_ch)
    bslab = bslab.at[ROW_B2, :EMBED_DIM].set(b2)
    bslab = bslab.at[ROW_G1, :EMBED_DIM].set(g1)
    bslab = bslab.at[ROW_BE1, :EMBED_DIM].set(be1)
    bslab = bslab.at[ROW_BF1, :].set(bf1)
    bslab = bslab.at[ROW_BF2, :EMBED_DIM].set(bf2)
    bslab = bslab.at[ROW_G2, :EMBED_DIM].set(g2)
    bslab = bslab.at[ROW_BE2, :EMBED_DIM].set(be2)

    return wslab, bslab, raw


# ---- pure-JAX reference (module math, (T,B,E) layout, raw params) -----------
def _layer_norm_ref(x, gamma, beta):
    mean = jnp.mean(x, axis=-1, keepdims=True)
    var = jnp.mean((x - mean) ** 2, axis=-1, keepdims=True)
    return (x - mean) * jax.lax.rsqrt(var + LN_EPS) * gamma + beta


def reference_forward(x, raw):
    h = x @ raw["W1"].T + raw["b1"]
    a, g = jnp.split(h, 2, axis=-1)
    y = a * jax.nn.sigmoid(g)                                  # (T, B, Cc)
    w_sm = jax.nn.softmax(raw["Wconv"], axis=-1)               # (H, K)
    w_ch = jnp.repeat(w_sm, HEAD_DIM, axis=0)                  # (Cc, K)
    T = x.shape[0]
    out = jnp.zeros_like(y)
    for k in range(KERNEL_SIZE):
        s = k - PAD_L
        if s >= 0:
            shifted = jnp.concatenate(
                [y[s:], jnp.zeros((s,) + y.shape[1:], y.dtype)], axis=0)
        else:
            shifted = jnp.concatenate(
                [jnp.zeros((-s,) + y.shape[1:], y.dtype), y[:T + s]], axis=0)
        out = out + w_ch[:, k][None, None, :] * shifted
    z = out @ raw["W2"].T + raw["b2"]
    z = x + z
    z = _layer_norm_ref(z, raw["g1"], raw["be1"])
    r = z
    f = jax.nn.relu(z @ raw["Wf1"].T + raw["bf1"])
    f = f @ raw["Wf2"].T + raw["bf2"]
    z = r + f
    z = _layer_norm_ref(z, raw["g2"], raw["be2"])
    return z


if __name__ == "__main__":
    key = jax.random.PRNGKey(0)
    kx, kp = jax.random.split(key)
    x = jax.random.normal(kx, (SEQ_LEN, BATCH, EMBED_DIM), jnp.float32)

    wslab, bslab, raw = init_params(kp)

    out = jax.block_until_ready(lightconv_encoder_layer(x, wslab, bslab))

    ref = reference_forward(x, raw)
    assert out.shape == (SEQ_LEN, BATCH, EMBED_DIM)
    err = float(jnp.max(jnp.abs(out - ref)))
    assert jnp.allclose(out, ref, atol=1e-4, rtol=1e-4), err

    print("KERNEL_OK")
</pallas_src>

<mosaic_0001>
module attributes {stable_mosaic.version = 11 : i64} {
  func.func @lightconv_encoder_layer_kernel(%arg0: memref<16x32xf32, #tpu.memory_space<vmem>>, %arg1: memref<160x64xf32, #tpu.memory_space<vmem>>, %arg2: memref<16x64xf32, #tpu.memory_space<vmem>>, %arg3: memref<16x32xf32, #tpu.memory_space<vmem>>) attributes {dimension_semantics = [], scalar_prefetch = 0 : i64, scratch_operands = 0 : i64, tpu.core_type = #tpu.core_type<tc>} {
    %c0 = arith.constant 0 : index
    %c0_0 = arith.constant 0 : index
    %0 = vector.load %arg0[%c0, %c0_0] : memref<16x32xf32, #tpu.memory_space<vmem>>, vector<16x32xf32>
    %c0_1 = arith.constant 0 : index
    %c0_2 = arith.constant 0 : index
    %1 = vector.load %arg2[%c0_1, %c0_2] : memref<16x64xf32, #tpu.memory_space<vmem>>, vector<16x64xf32>
    %c0_3 = arith.constant 0 : index
    %c0_4 = arith.constant 0 : index
    %2 = vector.load %arg1[%c0_3, %c0_4] : memref<160x64xf32, #tpu.memory_space<vmem>>, vector<32x64xf32>
    %cst = arith.constant dense<0.000000e+00> : vector<16x64xf32>
    %3 = tpu.matmul %0, %2, %cst {dimension_numbers = #tpu.dot_dimension_numbers<[1], [0], [0], [1], [0, 0, 1, 1], [], []>} : vector<16x32xf32>, vector<32x64xf32>, vector<16x64xf32> -> vector<16x64xf32>
    %4 = vector.extract_strided_slice %1 {offsets = [0, 0], sizes = [1, 64], strides = [1, 1]} : vector<16x64xf32> to vector<1x64xf32>
    %5 = vector.broadcast %4 : vector<1x64xf32> to vector<16x64xf32>
    %6 = arith.addf %3, %5 : vector<16x64xf32>
    %7 = vector.extract_strided_slice %6 {offsets = [0, 0], sizes = [16, 32], strides = [1, 1]} : vector<16x64xf32> to vector<16x32xf32>
    %8 = vector.extract_strided_slice %6 {offsets = [0, 32], sizes = [16, 32], strides = [1, 1]} : vector<16x64xf32> to vector<16x32xf32>
    %9 = arith.negf %8 : vector<16x32xf32>
    %10 = math.exp %9 : vector<16x32xf32>
    %cst_5 = arith.constant 1.000000e+00 : f32
    %11 = vector.broadcast %cst_5 : f32 to vector<16x32xf32>
    %12 = arith.addf %11, %10 : vector<16x32xf32>
    %13 = arith.divf %11, %12 : vector<16x32xf32>
    %14 = arith.mulf %7, %13 : vector<16x32xf32>
    %15 = tpu.iota {dimensions = array<i32: 0>} : vector<16x32xi32>
    %cst_6 = arith.constant 0.000000e+00 : f32
    %16 = vector.broadcast %cst_6 : f32 to vector<16x32xf32>
    %17 = vector.extract_strided_slice %1 {offsets = [1, 0], sizes = [1, 32], strides = [1, 1]} : vector<16x64xf32> to vector<1x32xf32>
    %c2_i32 = arith.constant 2 : i32
    %18 = tpu.dynamic_rotate %14 by %c2_i32 dim 0 : vector<16x32xf32>, i32 -> vector<16x32xf32>
    %c2_i32_7 = arith.constant 2 : i32
    %19 = vector.broadcast %c2_i32_7 : i32 to vector<16x32xi32>
    %20 = arith.cmpi sge, %15, %19 : vector<16x32xi32>
    %cst_8 = arith.constant 0.000000e+00 : f32
    %21 = vector.broadcast %cst_8 : f32 to vector<16x32xf32>
    %22 = arith.select %20, %18, %21 : vector<16x32xi1>, vector<16x32xf32>
    %23 = vector.broadcast %17 : vector<1x32xf32> to vector<16x32xf32>
    %24 = arith.mulf %23, %22 : vector<16x32xf32>
    %25 = arith.addf %16, %24 : vector<16x32xf32>
    %26 = vector.extract_strided_slice %1 {offsets = [2, 0], sizes = [1, 32], strides = [1, 1]} : vector<16x64xf32> to vector<1x32xf32>
    %27 = vector.broadcast %26 : vector<1x32xf32> to vector<16x32xf32>
    %28 = arith.mulf %27, %14 : vector<16x32xf32>
    %29 = arith.addf %25, %28 : vector<16x32xf32>
    %30 = vector.extract_strided_slice %1 {offsets = [3, 0], sizes = [1, 32], strides = [1, 1]} : vector<16x64xf32> to vector<1x32xf32>
    %c14_i32 = arith.constant 14 : i32
    %31 = tpu.dynamic_rotate %14 by %c14_i32 dim 0 : vector<16x32xf32>, i32 -> vector<16x32xf32>
    %c14_i32_9 = arith.constant 14 : i32
    %32 = vector.broadcast %c14_i32_9 : i32 to vector<16x32xi32>
    %33 = arith.cmpi slt, %15, %32 : vector<16x32xi32>
    %cst_10 = arith.constant 0.000000e+00 : f32
    %34 = vector.broadcast %cst_10 : f32 to vector<16x32xf32>
    %35 = arith.select %33, %31, %34 : vector<16x32xi1>, vector<16x32xf32>
    %36 = vector.broadcast %30 : vector<1x32xf32> to vector<16x32xf32>
    %37 = arith.mulf %36, %35 : vector<16x32xf32>
    %38 = arith.addf %29, %37 : vector<16x32xf32>
    %c32 = arith.constant 32 : index
    %c0_11 = arith.constant 0 : index
    %39 = vector.load %arg1[%c32, %c0_11] : memref<160x64xf32, #tpu.memory_space<vmem>>, vector<32x32xf32>
    %cst_12 = arith.constant dense<0.000000e+00> : vector<16x32xf32>
    %40 = tpu.matmul %38, %39, %cst_12 {dimension_numbers = #tpu.dot_dimension_numbers<[1], [0], [0], [1], [0, 0, 1, 1], [], []>} : vector<16x32xf32>, vector<32x32xf32>, vector<16x32xf32> -> vector<16x32xf32>
    %41 = vector.extract_strided_slice %1 {offsets = [4, 0], sizes = [1, 32], strides = [1, 1]} : vector<16x64xf32> to vector<1x32xf32>
    %42 = vector.broadcast %41 : vector<1x32xf32> to vector<16x32xf32>
    %43 = arith.addf %40, %42 : vector<16x32xf32>
    %44 = arith.addf %0, %43 : vector<16x32xf32>
    %45 = vector.extract_strided_slice %1 {offsets = [5, 0], sizes = [1, 32], strides = [1, 1]} : vector<16x64xf32> to vector<1x32xf32>
    %46 = vector.extract_strided_slice %1 {offsets = [6, 0], sizes = [1, 32], strides = [1, 1]} : vector<16x64xf32> to vector<1x32xf32>
    %cst_13 = arith.constant dense<0.000000e+00> : vector<16xf32>
    %47 = vector.multi_reduction <add>, %44, %cst_13 [1] : vector<16x32xf32> to vector<16xf32>
    %48 = vector.shape_cast %47 : vector<16xf32> to vector<16x1xf32>
    %49 = arith.mulf %44, %44 : vector<16x32xf32>
    %cst_14 = arith.constant dense<0.000000e+00> : vector<16xf32>
    %50 = vector.multi_reduction <add>, %49, %cst_14 [1] : vector<16x32xf32> to vector<16xf32>
    %51 = vector.shape_cast %50 : vector<16xf32> to vector<16x1xf32>
    %cst_15 = arith.constant 3.125000e-02 : f32
    %52 = vector.broadcast %cst_15 : f32 to vector<16x1xf32>
    %53 = arith.mulf %48, %52 : vector<16x1xf32>
    %cst_16 = arith.constant 3.125000e-02 : f32
    %54 = vector.broadcast %cst_16 : f32 to vector<16x1xf32>
    %55 = arith.mulf %51, %54 : vector<16x1xf32>
    %56 = arith.mulf %53, %53 : vector<16x1xf32>
    %57 = arith.subf %55, %56 : vector<16x1xf32>
    %58 = vector.broadcast %53 : vector<16x1xf32> to vector<16x32xf32>
    %59 = arith.subf %44, %58 : vector<16x32xf32>
    %cst_17 = arith.constant 9.99999974E-6 : f32
    %60 = vector.broadcast %cst_17 : f32 to vector<16x1xf32>
    %61 = arith.addf %57, %60 : vector<16x1xf32>
    %62 = math.rsqrt %61 : vector<16x1xf32>
    %63 = vector.broadcast %62 : vector<16x1xf32> to vector<16x32xf32>
    %64 = arith.mulf %59, %63 : vector<16x32xf32>
    %65 = vector.broadcast %45 : vector<1x32xf32> to vector<16x32xf32>
    %66 = arith.mulf %64, %65 : vector<16x32xf32>
    %67 = vector.broadcast %46 : vector<1x32xf32> to vector<16x32xf32>
    %68 = arith.addf %66, %67 : vector<16x32xf32>
    %c64 = arith.constant 64 : index
    %c0_18 = arith.constant 0 : index
    %69 = vector.load %arg1[%c64, %c0_18] : memref<160x64xf32, #tpu.memory_space<vmem>>, vector<32x64xf32>
    %cst_19 = arith.constant dense<0.000000e+00> : vector<16x64xf32>
    %70 = tpu.matmul %68, %69, %cst_19 {dimension_numbers = #tpu.dot_dimension_numbers<[1], [0], [0], [1], [0, 0, 1, 1], [], []>} : vector<16x32xf32>, vector<32x64xf32>, vector<16x64xf32> -> vector<16x64xf32>
    %71 = vector.extract_strided_slice %1 {offsets = [7, 0], sizes = [1, 64], strides = [1, 1]} : vector<16x64xf32> to vector<1x64xf32>
    %72 = vector.broadcast %71 : vector<1x64xf32> to vector<16x64xf32>
    %73 = arith.addf %70, %72 : vector<16x64xf32>
    %cst_20 = arith.constant 0.000000e+00 : f32
    %74 = vector.broadcast %cst_20 : f32 to vector<16x64xf32>
    %75 = arith.maximumf %73, %74 : vector<16x64xf32>
    %c96 = arith.constant 96 : index
    %c0_21 = arith.constant 0 : index
    %76 = vector.load %arg1[%c96, %c0_21] : memref<160x64xf32, #tpu.memory_space<vmem>>, vector<64x32xf32>
    %cst_22 = arith.constant dense<0.000000e+00> : vector<16x32xf32>
    %77 = tpu.matmul %75, %76, %cst_22 {dimension_numbers = #tpu.dot_dimension_numbers<[1], [0], [0], [1], [0, 0, 1, 1], [], []>} : vector<16x64xf32>, vector<64x32xf32>, vector<16x32xf32> -> vector<16x32xf32>
    %78 = vector.extract_strided_slice %1 {offsets = [8, 0], sizes = [1, 32], strides = [1, 1]} : vector<16x64xf32> to vector<1x32xf32>
    %79 = vector.broadcast %78 : vector<1x32xf32> to vector<16x32xf32>
    %80 = arith.addf %77, %79 : vector<16x32xf32>
    %81 = arith.addf %68, %80 : vector<16x32xf32>
    %82 = vector.extract_strided_slice %1 {offsets = [9, 0], sizes = [1, 32], strides = [1, 1]} : vector<16x64xf32> to vector<1x32xf32>
    %83 = vector.extract_strided_slice %1 {offsets = [10, 0], sizes = [1, 32], strides = [1, 1]} : vector<16x64xf32> to vector<1x32xf32>
    %cst_23 = arith.constant dense<0.000000e+00> : vector<16xf32>
    %84 = vector.multi_reduction <add>, %81, %cst_23 [1] : vector<16x32xf32> to vector<16xf32>
    %85 = vector.shape_cast %84 : vector<16xf32> to vector<16x1xf32>
    %86 = arith.mulf %81, %81 : vector<16x32xf32>
    %cst_24 = arith.constant dense<0.000000e+00> : vector<16xf32>
    %87 = vector.multi_reduction <add>, %86, %cst_24 [1] : vector<16x32xf32> to vector<16xf32>
    %88 = vector.shape_cast %87 : vector<16xf32> to vector<16x1xf32>
    %cst_25 = arith.constant 3.125000e-02 : f32
    %89 = vector.broadcast %cst_25 : f32 to vector<16x1xf32>
    %90 = arith.mulf %85, %89 : vector<16x1xf32>
    %cst_26 = arith.constant 3.125000e-02 : f32
    %91 = vector.broadcast %cst_26 : f32 to vector<16x1xf32>
    %92 = arith.mulf %88, %91 : vector<16x1xf32>
    %93 = arith.mulf %90, %90 : vector<16x1xf32>
    %94 = arith.subf %92, %93 : vector<16x1xf32>
    %95 = vector.broadcast %90 : vector<16x1xf32> to vector<16x32xf32>
    %96 = arith.subf %81, %95 : vector<16x32xf32>
    %cst_27 = arith.constant 9.99999974E-6 : f32
    %97 = vector.broadcast %cst_27 : f32 to vector<16x1xf32>
    %98 = arith.addf %94, %97 : vector<16x1xf32>
    %99 = math.rsqrt %98 : vector<16x1xf32>
    %100 = vector.broadcast %99 : vector<16x1xf32> to vector<16x32xf32>
    %101 = arith.mulf %96, %100 : vector<16x32xf32>
    %102 = vector.broadcast %82 : vector<1x32xf32> to vector<16x32xf32>
    %103 = arith.mulf %101, %102 : vector<16x32xf32>
    %104 = vector.broadcast %83 : vector<1x32xf32> to vector<16x32xf32>
    %105 = arith.addf %103, %104 : vector<16x32xf32>
    %c0_28 = arith.constant 0 : index
    %c0_29 = arith.constant 0 : index
    %106 = vector.load %arg3[%c0_28, %c0_29] : memref<16x32xf32, #tpu.memory_space<vmem>>, vector<16x32xf32>
    tpu.vector_store %arg3[%c0_28, %c0_29], %105 {strides = array<i32>} : memref<16x32xf32, #tpu.memory_space<vmem>>, vector<16x32xf32>,
    return
  }
}

</mosaic_0001>

<llo_original>
// kernel: lightconv_encoder_layer.1
$region0: #{lightconv_encoder_layer.1}
  #allocation0 [shape = 'u32[]', space=smem, size = 0x4, offset = 0x4, fixed_abs, tag = 'smem constant byte address 0x4 - core index']
  #allocation1 [shape = 'u32[144,128]{1,0:T(1,128)}', space=vmem, size = 0x12000, scoped, tag = 'internal scratch']
  %s0 = inlined_call_operand.vmem [shape: f32[16,32], index: 0, kind: input, shape index: {}]
  %s1 = inlined_call_operand.vmem [shape: f32[160,64], index: 1, kind: input, shape index: {}]
  %s2 = inlined_call_operand.vmem [shape: f32[16,64], index: 2, kind: input, shape index: {}]
  %s3 = inlined_call_operand.hbm [shape: f32[16,32], index: 3, kind: output, shape index: {}]
  %s4 = sld [smem:[#allocation0]]
  $region22: #{lightconv_encoder_layer.1} parent=0
    _
  %s6 = ssub.s32 1, %s4
  %s7 = scalar_select 0, %s6, %s4
  $region1: #{lightconv_encoder_layer.1} parent=0
    #allocation2 [shape = 'u8[8192]{0}', space=vmem, size = 0x2000, scoped, tag = 'output window, operand 0, single buffered']
    #allocation3 [shape = 's32[1]{0}', space=sflag, size = 0x4, scoped, tag = 'scoped memory for lightconv_encoder_layer.1']
    %8 = vsyncpa [#allocation3], 0
    // Predicated region
    $region2: #{lightconv_encoder_layer.1} parent=1 // pred_check
      _
    $region3: #{lightconv_encoder_layer.1} parent=1 // pred_check_branch
      %10 = sbr.rel (0) target = $region5
    $region4: #{lightconv_encoder_layer.1} parent=1 // pred_region
      _
    $region5: #{lightconv_encoder_layer.1} parent=1 // pred_fallthru
      _
    // Predicated region
    $region6: #{lightconv_encoder_layer.1} parent=1 // pred_check
      _
    $region7: #{lightconv_encoder_layer.1} parent=1 // pred_check_branch
      %12 = sbr.rel (0) target = $region9
    $region8: #{lightconv_encoder_layer.1} parent=1 // pred_region
      _
    $region9: #{lightconv_encoder_layer.1} parent=1 // pred_fallthru
      _
    // Predicated region
    $region10: #{lightconv_encoder_layer.1} parent=1 // pred_check
      _
    $region11: #{lightconv_encoder_layer.1} parent=1 // pred_check_branch
      %14 = sbr.rel (0) target = $region13
    $region12: #{lightconv_encoder_layer.1} parent=1 // pred_region
      _
    $region13: #{lightconv_encoder_layer.1} parent=1 // pred_fallthru
      _
    %v15 = vld [vmem:[%s0] sm:$0xff]
    %v16 = vld [vmem:[%s0 + $0x8] sm:$0xff]
    %v17 = vld [vmem:[%s2] sm:$0xff]
    %v18 = vld [vmem:[%s2 + $0x8] sm:$0xff]
    %v19 = vld [vmem:[%s1] sm:$0xff]
    %v20 = vld [vmem:[%s1 + $0x8] sm:$0xff]
    %v21 = vld [vmem:[%s1 + $0x10] sm:$0xff]
    %v22 = vld [vmem:[%s1 + $0x18] sm:$0xff]
    %v23 = vlaneseq
    %v24 = vshrl.u32 %v23, 7
    %v25 = vsub.s32 0, %v24
    %v26 = vrot.slane %v17, %v25
    %vm27 = vcmask 261120
    %v29 = vsel %vm27, %v15, 0
    %v32 = vsel %vm27, %v16, 0
    %34 = vmatprep.subr.mxu0 0.0
    %35 = vmatpush1.msra.mxu0 %v19
    %36 = vmatprep.subr.mxu0 0.0
    %37 = vmatpush1.msra.mxu0 %v20
    %38 = vmatprep.subr.mxu0 0.0
    %39 = vmatpush1.msra.mxu0 %v21
    %40 = vmatprep.subr.mxu0 0.0
    %41 = vmatpush1.msra.mxu0 %v22
    %42 = vmatprep.subr.mxu0 0.0
    %43 = vmatpush1.msra.mxu0 0.0
    %44 = vmatprep.subr.mxu0 0.0
    %45 = vmatpush1.msra.mxu0 0.0
    %46 = vmatprep.subr.mxu0 0.0
    %47 = vmatpush1.msra.mxu0 0.0
    %48 = vmatprep.subr.mxu0 0.0
    %49 = vmatpush1.msra.mxu0 0.0
    %50 = vmatprep.subr.mxu0 0.0
    %51 = vmatpush1.msra.mxu0 0.0
    %52 = vmatprep.subr.mxu0 0.0
    %53 = vmatpush1.msra.mxu0 0.0
    %54 = vmatprep.subr.mxu0 0.0
    %55 = vmatpush1.msra.mxu0 0.0
    %56 = vmatprep.subr.mxu0 0.0
    %57 = vmatpush1.msra.mxu0 0.0
    %58 = vmatprep.subr.mxu0 0.0
    %59 = vmatpush1.msra.mxu0 0.0
    %60 = vmatprep.subr.mxu0 0.0
    %61 = vmatpush1.msra.mxu0 0.0
    %62 = vmatprep.subr.mxu0 0.0
    %63 = vmatpush1.msra.mxu0 0.0
    %64 = vmatprep.subr.mxu0 0.0
    %65 = vmatpush1.msra.mxu0 0.0
    %66 = vmatprep.subr.mxu0 0.0
    %67 = vmatpush1.msra.mxu0 0.0
    %68 = vmatprep.subr.mxu0 0.0
    %69 = vmatpush1.msra.mxu0 0.0
    %70 = vmatprep.subr.mxu0 0.0
    %71 = vmatpush1.msra.mxu0 0.0
    %72 = vmatprep.subr.mxu0 0.0
    %73 = vmatpush1.msra.mxu0 0.0
    %74 = vmatprep.subr.mxu0 0.0
    %75 = vmatpush1.msra.mxu0 0.0
    %76 = vmatprep.subr.mxu0 0.0
    %77 = vmatpush1.msra.mxu0 0.0
    %78 = vmatprep.subr.mxu0 0.0
    %79 = vmatpush1.msra.mxu0 0.0
    %80 = vmatprep.subr.mxu0 0.0
    %81 = vmatpush1.msra.mxu0 0.0
    %82 = vmatprep.subr.mxu0 0.0
    %83 = vmatpush1.msra.mxu0 0.0
    %84 = vmatprep.subr.mxu0 0.0
    %85 = vmatpush1.msra.mxu0 0.0
    %86 = vmatprep.subr.mxu0 0.0
    %87 = vmatpush1.msra.mxu0 0.0
    %88 = vmatprep.subr.mxu0 0.0
    %89 = vmatpush1.msra.mxu0 0.0
    %90 = vmatprep.subr.mxu0 0.0
    %91 = vmatpush1.msra.mxu0 0.0
    %92 = vmatprep.subr.mxu0 0.0
    %93 = vmatpush1.msra.mxu0 0.0
    %94 = vmatprep.subr.mxu0 0.0
    %95 = vmatpush1.msra.mxu0 0.0
    %96 = vmatprep.subr.mxu0 0.0
    %97 = vmatpush1.msra.mxu0 0.0
    %98 = vmatprep.mubr.f32.mxu0 0.0
    %99 = vmatmul.mubr.f32.gmra.mrb[0].mxu0 %v29
    %v100 = vpop.f32.mrb[0].mxu0
    %v101 = vadd.f32 %v26, %v100
    %v102 = vpop.f32.mrb[0].mxu0
    %103 = vmatprep.mubr.f32.mxu0 0.0
    %104 = vmatmul.mubr.f32.gmra.mrb[0].mxu0 %v32
    %v105 = vpop.f32.mrb[0].mxu0
    %v106 = vadd.f32 %v26, %v105
    %v107 = vpop.f32.mrb[0].mxu0
    %108 = vdwg.mxu0
    %v109 = vxor.u32 %v101, 2147483648
    %v110 = vxor.u32 %v106, 2147483648
    %v111 = vmul.f32 %v109, 1.442695
    %v112 = vpow.pop %v111
    %v113 = vmul.f32 %v110, 1.442695
    %v114 = vpow.pop %v113
    %v115 = vadd.f32 %v112, 1.0
    %v116 = vadd.f32 %v114, 1.0
    %v117 = vrcp.pop %v115
    %v118 = vmul.f32 1.0, %v117
    %v119 = vrcp.pop %v116
    %v120 = vmul.f32 1.0, %v119
    %123 = vrot.lane.b32.xlu0 %v118, 96
    %v124 = vpop.permute.xlu0 %123
    %125 = vrot.lane.b32.xlu0 %v120, 96
    %v126 = vpop.permute.xlu0 %125
    %v129 = vmul.f32 %v101, %v124
    %v130 = vmul.f32 %v106, %v126
    %v131 = vlaneseq
    %v132 = vshrl.u32 %v131, 7
    %v133 = vadd.s32 %v132, 8
    %v134 = vrot.slane %v129, 6
    %v135 = vrot.slane %v130, 6
    %vm136 = vcmp.lt.s32.totalorder %v132, 2
    %v137 = vsel %vm136, %v134, %v135
    %v138 = vsel %vm136, %v135, %v134
    %vm139 = vcmp.ge.s32.totalorder %v132, 2
    %vm140 = vcmp.ge.s32.totalorder %v133, 2
    %v141 = vsel %vm139, %v138, 0.0
    %v142 = vsel %vm140, %v137, 0.0
    %v143 = vlaneseq
    %v144 = vshrl.u32 %v143, 7
    %v145 = vsub.s32 1, %v144
    %v146 = vrot.slane %v17, %v145
    %v147 = vmul.f32 %v146, %v141
    %v148 = vmul.f32 %v146, %v142
    %v149 = vadd.f32 %v147, 0.0
    %v150 = vadd.f32 %v148, 0.0
    %v151 = vlaneseq
    %v152 = vshrl.u32 %v151, 7
    %v153 = vsub.s32 2, %v152
    %v154 = vrot.slane %v17, %v153
    %v155 = vmul.f32 %v154, %v129
    %v156 = vmul.f32 %v154, %v130
    %v157 = vadd.f32 %v149, %v155
    %v158 = vadd.f32 %v150, %v156
    %v159 = vrot.slane %v129, 2
    %v160 = vrot.slane %v130, 2
    %vm161 = vcmp.lt.s32.totalorder %v132, 6
    %v162 = vsel %vm161, %v159, %v160
    %v163 = vsel %vm161, %v160, %v159
    %vm164 = vcmp.lt.s32.totalorder %v132, 14
    %vm165 = vcmp.lt.s32.totalorder %v133, 14
    %v166 = vsel %vm164, %v162, 0.0
    %v167 = vsel %vm165, %v163, 0.0
    %v168 = vlaneseq
    %v169 = vshrl.u32 %v168, 7
    %v170 = vsub.s32 3, %v169
    %v171 = vrot.slane %v17, %v170
    %v172 = vmul.f32 %v171, %v166
    %v173 = vmul.f32 %v171, %v167
    %v174 = vadd.f32 %v157, %v172
    %v175 = vadd.f32 %v158, %v173
    %v176 = vld [vmem:[%s1 + $0x20] sm:$0xff]
    %v177 = vld [vmem:[%s1 + $0x28] sm:$0xff]
    %v178 = vld [vmem:[%s1 + $0x30] sm:$0xff]
    %v179 = vld [vmem:[%s1 + $0x38] sm:$0xff]
    %v180 = vlaneseq
    %v181 = vshrl.u32 %v180, 7
    %v182 = vsub.s32 4, %v181
    %v183 = vrot.slane %v17, %v182
    %v185 = vsel %vm27, %v174, 0
    %v188 = vsel %vm27, %v175, 0
    %190 = vmatprep.subr.mxu0 0.0
    %191 = vmatpush1.msra.mxu0 %v176
    %192 = vmatprep.subr.mxu0 0.0
    %193 = vmatpush1.msra.mxu0 %v177
    %194 = vmatprep.subr.mxu0 0.0
    %195 = vmatpush1.msra.mxu0 %v178
    %196 = vmatprep.subr.mxu0 0.0
    %197 = vmatpush1.msra.mxu0 %v179
    %198 = vmatprep.subr.mxu0 0.0
    %199 = vmatpush1.msra.mxu0 0.0
    %200 = vmatprep.subr.mxu0 0.0
    %201 = vmatpush1.msra.mxu0 0.0
    %202 = vmatprep.subr.mxu0 0.0
    %203 = vmatpush1.msra.mxu0 0.0
    %204 = vmatprep.subr.mxu0 0.0
    %205 = vmatpush1.msra.mxu0 0.0
    %206 = vmatprep.subr.mxu0 0.0
    %207 = vmatpush1.msra.mxu0 0.0
    %208 = vmatprep.subr.mxu0 0.0
    %209 = vmatpush1.msra.mxu0 0.0
    %210 = vmatprep.subr.mxu0 0.0
    %211 = vmatpush1.msra.mxu0 0.0
    %212 = vmatprep.subr.mxu0 0.0
    %213 = vmatpush1.msra.mxu0 0.0
    %214 = vmatprep.subr.mxu0 0.0
    %215 = vmatpush1.msra.mxu0 0.0
    %216 = vmatprep.subr.mxu0 0.0
    %217 = vmatpush1.msra.mxu0 0.0
    %218 = vmatprep.subr.mxu0 0.0
    %219 = vmatpush1.msra.mxu0 0.0
    %220 = vmatprep.subr.mxu0 0.0
    %221 = vmatpush1.msra.mxu0 0.0
    %222 = vmatprep.subr.mxu0 0.0
    %223 = vmatpush1.msra.mxu0 0.0
    %224 = vmatprep.subr.mxu0 0.0
    %225 = vmatpush1.msra.mxu0 0.0
    %226 = vmatprep.subr.mxu0 0.0
    %227 = vmatpush1.msra.mxu0 0.0
    %228 = vmatprep.subr.mxu0 0.0
    %229 = vmatpush1.msra.mxu0 0.0
    %230 = vmatprep.subr.mxu0 0.0
    %231 = vmatpush1.msra.mxu0 0.0
    %232 = vmatprep.subr.mxu0 0.0
    %233 = vmatpush1.msra.mxu0 0.0
    %234 = vmatprep.subr.mxu0 0.0
    %235 = vmatpush1.msra.mxu0 0.0
    %236 = vmatprep.subr.mxu0 0.0
    %237 = vmatpush1.msra.mxu0 0.0
    %238 = vmatprep.subr.mxu0 0.0
    %239 = vmatpush1.msra.mxu0 0.0
    %240 = vmatprep.subr.mxu0 0.0
    %241 = vmatpush1.msra.mxu0 0.0
    %242 = vmatprep.subr.mxu0 0.0
    %243 = vmatpush1.msra.mxu0 0.0
    %244 = vmatprep.subr.mxu0 0.0
    %245 = vmatpush1.msra.mxu0 0.0
    %246 = vmatprep.subr.mxu0 0.0
    %247 = vmatpush1.msra.mxu0 0.0
    %248 = vmatprep.subr.mxu0 0.0
    %249 = vmatpush1.msra.mxu0 0.0
    %250 = vmatprep.subr.mxu0 0.0
    %251 = vmatpush1.msra.mxu0 0.0
    %252 = vmatprep.subr.mxu0 0.0
    %253 = vmatpush1.msra.mxu0 0.0
    %254 = vmatprep.mubr.f32.mxu0 0.0
    %255 = vmatmul.mubr.f32.gmra.mrb[0].mxu0 %v185
    %v256 = vpop.f32.mrb[0].mxu0
    %v257 = vadd.f32 %v183, %v256
    %v258 = vpop.f32.mrb[0].mxu0
    %259 = vmatprep.mubr.f32.mxu0 0.0
    %260 = vmatmul.mubr.f32.gmra.mrb[0].mxu0 %v188
    %v261 = vpop.f32.mrb[0].mxu0
    %v262 = vadd.f32 %v183, %v261
    %v263 = vpop.f32.mrb[0].mxu0
    %264 = vdwg.mxu0
    %v265 = vadd.f32 %v15, %v257
    %v266 = vadd.f32 %v16, %v262
    %v267 = vsel %vm27, %v265, 0.0
    %268 = vadd.xlane.f32.xlu0 %v267
    %v269 = vpop.xlane.xlu0 %268
    %v270 = vsel %vm27, %v266, 0.0
    %271 = vadd.xlane.f32.xlu0 %v270
    %v272 = vpop.xlane.xlu0 %271
    %v273 = vmul.f32 %v265, %v265
    %v274 = vmul.f32 %v266, %v266
    %v275 = vsel %vm27, %v273, 0.0
    %276 = vadd.xlane.f32.xlu0 %v275
    %v277 = vpop.xlane.xlu0 %276
    %v278 = vsel %vm27, %v274, 0.0
    %279 = vadd.xlane.f32.xlu0 %v278
    %v280 = vpop.xlane.xlu0 %279
    %v281 = vmul.f32 %v269, 0.03125
    %v282 = vmul.f32 %v272, 0.03125
    %v283 = vmul.f32 %v277, 0.03125
    %v284 = vmul.f32 %v280, 0.03125
    %v285 = vmul.f32 %v281, %v281
    %v286 = vmul.f32 %v282, %v282
    %v287 = vsub.f32 %v283, %v285
    %v288 = vsub.f32 %v284, %v286
    %v289 = vsub.f32 %v265, %v281
    %v290 = vsub.f32 %v266, %v282
    %v291 = vadd.f32 %v287, 1e-05
    %v292 = vadd.f32 %v288, 1e-05
    %v293 = vrsqrt.pop %v291
    %v294 = vrsqrt.pop %v292
    %v295 = vmul.f32 %v289, %v293
    %v296 = vmul.f32 %v290, %v294
    %v297 = vlaneseq
    %v298 = vshrl.u32 %v297, 7
    %v299 = vsub.s32 5, %v298
    %v300 = vrot.slane %v17, %v299
    %v301 = vmul.f32 %v295, %v300
    %v302 = vmul.f32 %v296, %v300
    %v303 = vlaneseq
    %v304 = vshrl.u32 %v303, 7
    %v305 = vsub.s32 6, %v304
    %v306 = vrot.slane %v17, %v305
    %v307 = vadd.f32 %v301, %v306
    %v308 = vadd.f32 %v302, %v306
    %v309 = vld [vmem:[%s1 + $0x40] sm:$0xff]
    %v310 = vld [vmem:[%s1 + $0x48] sm:$0xff]
    %v311 = vld [vmem:[%s1 + $0x50] sm:$0xff]
    %v312 = vld [vmem:[%s1 + $0x58] sm:$0xff]
    %v313 = vlaneseq
    %v314 = vshrl.u32 %v313, 7
    %v315 = vsub.s32 7, %v314
    %v316 = vrot.slane %v17, %v315
    %v318 = vsel %vm27, %v307, 0
    %v321 = vsel %vm27, %v308, 0
    %323 = vmatprep.subr.mxu0 0.0
    %324 = vmatpush1.msra.mxu0 %v309
    %325 = vmatprep.subr.mxu0 0.0
    %326 = vmatpush1.msra.mxu0 %v310
    %327 = vmatprep.subr.mxu0 0.0
    %328 = vmatpush1.msra.mxu0 %v311
    %329 = vmatprep.subr.mxu0 0.0
    %330 = vmatpush1.msra.mxu0 %v312
    %331 = vmatprep.subr.mxu0 0.0
    %332 = vmatpush1.msra.mxu0 0.0
    %333 = vmatprep.subr.mxu0 0.0
    %334 = vmatpush1.msra.mxu0 0.0
    %335 = vmatprep.subr.mxu0 0.0
    %336 = vmatpush1.msra.mxu0 0.0
    %337 = vmatprep.subr.mxu0 0.0
    %338 = vmatpush1.msra.mxu0 0.0
    %339 = vmatprep.subr.mxu0 0.0
    %340 = vmatpush1.msra.mxu0 0.0
    %341 = vmatprep.subr.mxu0 0.0
    %342 = vmatpush1.msra.mxu0 0.0
    %343 = vmatprep.subr.mxu0 0.0
    %344 = vmatpush1.msra.mxu0 0.0
    %345 = vmatprep.subr.mxu0 0.0
    %346 = vmatpush1.msra.mxu0 0.0
    %347 = vmatprep.subr.mxu0 0.0
    %348 = vmatpush1.msra.mxu0 0.0
    %349 = vmatprep.subr.mxu0 0.0
    %350 = vmatpush1.msra.mxu0 0.0
    %351 = vmatprep.subr.mxu0 0.0
    %352 = vmatpush1.msra.mxu0 0.0
    %353 = vmatprep.subr.mxu0 0.0
    %354 = vmatpush1.msra.mxu0 0.0
    %355 = vmatprep.subr.mxu0 0.0
    %356 = vmatpush1.msra.mxu0 0.0
    %357 = vmatprep.subr.mxu0 0.0
    %358 = vmatpush1.msra.mxu0 0.0
    %359 = vmatprep.subr.mxu0 0.0
    %360 = vmatpush1.msra.mxu0 0.0
    %361 = vmatprep.subr.mxu0 0.0
    %362 = vmatpush1.msra.mxu0 0.0
    %363 = vmatprep.subr.mxu0 0.0
    %364 = vmatpush1.msra.mxu0 0.0
    %365 = vmatprep.subr.mxu0 0.0
    %366 = vmatpush1.msra.mxu0 0.0
    %367 = vmatprep.subr.mxu0 0.0
    %368 = vmatpush1.msra.mxu0 0.0
    %369 = vmatprep.subr.mxu0 0.0
    %370 = vmatpush1.msra.mxu0 0.0
    %371 = vmatprep.subr.mxu0 0.0
    %372 = vmatpush1.msra.mxu0 0.0
    %373 = vmatprep.subr.mxu0 0.0
    %374 = vmatpush1.msra.mxu0 0.0
    %375 = vmatprep.subr.mxu0 0.0
    %376 = vmatpush1.msra.mxu0 0.0
    %377 = vmatprep.subr.mxu0 0.0
    %378 = vmatpush1.msra.mxu0 0.0
    %379 = vmatprep.subr.mxu0 0.0
    %380 = vmatpush1.msra.mxu0 0.0
    %381 = vmatprep.subr.mxu0 0.0
    %382 = vmatpush1.msra.mxu0 0.0
    %383 = vmatprep.subr.mxu0 0.0
    %384 = vmatpush1.msra.mxu0 0.0
    %385 = vmatprep.subr.mxu0 0.0
    %386 = vmatpush1.msra.mxu0 0.0
    %387 = vmatprep.mubr.f32.mxu0 0.0
    %388 = vmatmul.mubr.f32.gmra.mrb[0].mxu0 %v318
    %v389 = vpop.f32.mrb[0].mxu0
    %v390 = vadd.f32 %v316, %v389
    %v391 = vpop.f32.mrb[0].mxu0
    %392 = vmatprep.mubr.f32.mxu0 0.0
    %393 = vmatmul.mubr.f32.gmra.mrb[0].mxu0 %v321
    %v394 = vpop.f32.mrb[0].mxu0
    %v395 = vadd.f32 %v316, %v394
    %v396 = vpop.f32.mrb[0].mxu0
    %397 = vdwg.mxu0
    %v398 = vmax.f32 %v390, 0.0
    %v399 = vmax.f32 %v395, 0.0
    %v400 = vld [vmem:[%s1 + $0x60] sm:$0xff]
    %v401 = vld [vmem:[%s1 + $0x68] sm:$0xff]
    %v402 = vld [vmem:[%s1 + $0x70] sm:$0xff]
    %v403 = vld [vmem:[%s1 + $0x78] sm:$0xff]
    %v404 = vld [vmem:[%s1 + $0x80] sm:$0xff]
    %v405 = vld [vmem:[%s1 + $0x88] sm:$0xff]
    %v406 = vld [vmem:[%s1 + $0x90] sm:$0xff]
    %v407 = vld [vmem:[%s1 + $0x98] sm:$0xff]
    %v408 = vlaneseq
    %v409 = vshrl.u32 %v408, 7
    %v410 = vsub.s32 0, %v409
    %v411 = vrot.slane %v18, %v410
    %vm412 = vcmask 523264
    %v414 = vsel %vm412, %v398, 0
    %v417 = vsel %vm412, %v399, 0
    %419 = vmatprep.subr.mxu0 0.0
    %420 = vmatpush1.msra.mxu0 %v400
    %421 = vmatprep.subr.mxu0 0.0
    %422 = vmatpush1.msra.mxu0 %v401
    %423 = vmatprep.subr.mxu0 0.0
    %424 = vmatpush1.msra.mxu0 %v402
    %425 = vmatprep.subr.mxu0 0.0
    %426 = vmatpush1.msra.mxu0 %v403
    %427 = vmatprep.subr.mxu0 0.0
    %428 = vmatpush1.msra.mxu0 %v404
    %429 = vmatprep.subr.mxu0 0.0
    %430 = vmatpush1.msra.mxu0 %v405
    %431 = vmatprep.subr.mxu0 0.0
    %432 = vmatpush1.msra.mxu0 %v406
    %433 = vmatprep.subr.mxu0 0.0
    %434 = vmatpush1.msra.mxu0 %v407
    %435 = vmatprep.subr.mxu0 0.0
    %436 = vmatpush1.msra.mxu0 0.0
    %437 = vmatprep.subr.mxu0 0.0
    %438 = vmatpush1.msra.mxu0 0.0
    %439 = vmatprep.subr.mxu0 0.0
    %440 = vmatpush1.msra.mxu0 0.0
    %441 = vmatprep.subr.mxu0 0.0
    %442 = vmatpush1.msra.mxu0 0.0
    %443 = vmatprep.subr.mxu0 0.0
    %444 = vmatpush1.msra.mxu0 0.0
    %445 = vmatprep.subr.mxu0 0.0
    %446 = vmatpush1.msra.mxu0 0.0
    %447 = vmatprep.subr.mxu0 0.0
    %448 = vmatpush1.msra.mxu0 0.0
    %449 = vmatprep.subr.mxu0 0.0
    %450 = vmatpush1.msra.mxu0 0.0
    %451 = vmatprep.subr.mxu0 0.0
    %452 = vmatpush1.msra.mxu0 0.0
    %453 = vmatprep.subr.mxu0 0.0
    %454 = vmatpush1.msra.mxu0 0.0
    %455 = vmatprep.subr.mxu0 0.0
    %456 = vmatpush1.msra.mxu0 0.0
    %457 = vmatprep.subr.mxu0 0.0
    %458 = vmatpush1.msra.mxu0 0.0
    %459 = vmatprep.subr.mxu0 0.0
    %460 = vmatpush1.msra.mxu0 0.0
    %461 = vmatprep.subr.mxu0 0.0
    %462 = vmatpush1.msra.mxu0 0.0
    %463 = vmatprep.subr.mxu0 0.0
    %464 = vmatpush1.msra.mxu0 0.0
    %465 = vmatprep.subr.mxu0 0.0
    %466 = vmatpush1.msra.mxu0 0.0
    %467 = vmatprep.subr.mxu0 0.0
    %468 = vmatpush1.msra.mxu0 0.0
    %469 = vmatprep.subr.mxu0 0.0
    %470 = vmatpush1.msra.mxu0 0.0
    %471 = vmatprep.subr.mxu0 0.0
    %472 = vmatpush1.msra.mxu0 0.0
    %473 = vmatprep.subr.mxu0 0.0
    %474 = vmatpush1.msra.mxu0 0.0
    %475 = vmatprep.subr.mxu0 0.0
    %476 = vmatpush1.msra.mxu0 0.0
    %477 = vmatprep.subr.mxu0 0.0
    %478 = vmatpush1.msra.mxu0 0.0
    %479 = vmatprep.subr.mxu0 0.0
    %480 = vmatpush1.msra.mxu0 0.0
    %481 = vmatprep.subr.mxu0 0.0
    %482 = vmatpush1.msra.mxu0 0.0
    %483 = vmatprep.mubr.f32.mxu0 0.0
    %484 = vmatmul.mubr.f32.gmra.mrb[0].mxu0 %v414
    %v485 = vpop.f32.mrb[0].mxu0
    %v486 = vadd.f32 %v411, %v485
    %v487 = vpop.f32.mrb[0].mxu0
    %488 = vmatprep.mubr.f32.mxu0 0.0
    %489 = vmatmul.mubr.f32.gmra.mrb[0].mxu0 %v417
    %v490 = vpop.f32.mrb[0].mxu0
    %v491 = vadd.f32 %v411, %v490
    %v492 = vpop.f32.mrb[0].mxu0
    %493 = vdwg.mxu0
    %v494 = vadd.f32 %v307, %v486
    %v495 = vadd.f32 %v308, %v491
    %v496 = vsel %vm27, %v494, 0.0
    %497 = vadd.xlane.f32.xlu0 %v496
    %v498 = vpop.xlane.xlu0 %497
    %v499 = vsel %vm27, %v495, 0.0
    %500 = vadd.xlane.f32.xlu0 %v499
    %v501 = vpop.xlane.xlu0 %500
    %v502 = vmul.f32 %v494, %v494
    %v503 = vmul.f32 %v495, %v495
    %v504 = vsel %vm27, %v502, 0.0
    %505 = vadd.xlane.f32.xlu0 %v504
    %v506 = vpop.xlane.xlu0 %505
    %v507 = vsel %vm27, %v503, 0.0
    %508 = vadd.xlane.f32.xlu0 %v507
    %v509 = vpop.xlane.xlu0 %508
    %v510 = vmul.f32 %v498, 0.03125
    %v511 = vmul.f32 %v501, 0.03125
    %v512 = vmul.f32 %v506, 0.03125
    %v513 = vmul.f32 %v509, 0.03125
    %v514 = vmul.f32 %v510, %v510
    %v515 = vmul.f32 %v511, %v511
    %v516 = vsub.f32 %v512, %v514
    %v517 = vsub.f32 %v513, %v515
    %v518 = vsub.f32 %v494, %v510
    %v519 = vsub.f32 %v495, %v511
    %v520 = vadd.f32 %v516, 1e-05
    %v521 = vadd.f32 %v517, 1e-05
    %v522 = vrsqrt.pop %v520
    %v523 = vrsqrt.pop %v521
    %v524 = vmul.f32 %v518, %v522
    %v525 = vmul.f32 %v519, %v523
    %v526 = vlaneseq
    %v527 = vshrl.u32 %v526, 7
    %v528 = vsub.s32 1, %v527
    %v529 = vrot.slane %v18, %v528
    %v530 = vmul.f32 %v524, %v529
    %v531 = vmul.f32 %v525, %v529
    %v532 = vlaneseq
    %v533 = vshrl.u32 %v532, 7
    %v534 = vsub.s32 2, %v533
    %v535 = vrot.slane %v18, %v534
    %v536 = vadd.f32 %v530, %v535
    %v537 = vadd.f32 %v531, %v535
    %538 = vst.msk [vmem:[#allocation2] sm:$0xff] %vm27, %v536
    %539 = vst.msk [vmem:[#allocation2 + $0x8] sm:$0xff] %vm27, %v537
    // Predicated region
    $region14: #{lightconv_encoder_layer.1} parent=1 // pred_check
      _
    $region15: #{lightconv_encoder_layer.1} parent=1 // pred_check_branch
      %541 = sbr.rel (0) target = $region17
    $region16: #{lightconv_encoder_layer.1} parent=1 // pred_region
      %s543 = ssub.s32 256, 256
      %544 = vsyncadd [#allocation3], %s543
      %s545 = sshll.u32 [#allocation2], 4
      %s546 = int_to_ptr.vmem [resolvable:$true] %s545
      %551 = dma.vmem_to_hbm [thread:$0]  %s546, 256, %s3, [#allocation3], 128, 128, 8
    $region17: #{lightconv_encoder_layer.1} parent=1 // pred_fallthru
      _
    // Predicated region
    $region18: #{lightconv_encoder_layer.1} parent=1 // pred_check
      _
    $region19: #{lightconv_encoder_layer.1} parent=1 // pred_check_branch
      %553 = sbr.rel (0) target = $region21
    $region20: #{lightconv_encoder_layer.1} parent=1 // pred_region
      %554 = dma.done [#allocation3], 256
    $region21: #{lightconv_encoder_layer.1} parent=1 // pred_fallthru
      _
    %555 = vsyncpa [#allocation3], 1

</llo_original>
